<compile_context>
chip_gen: v7x
topology: tpu7x:2x2x1
jax: 0.10.0
libtpu: 0.0.40
codegen_flags: <defaults>
</compile_context>

<pallas_src>
import functools

import jax
import jax.numpy as jnp
from jax.experimental import pallas as pl
from jax.experimental.pallas import tpu as pltpu


def _patch_embed_kernel(lhs_ref, w_ref, pos_ref, o_ref):
    """out = lhs @ W (bf16 operands, f32 acc) + pos, one aligned tile per step.

    lhs_ref: (bb, tt, K_pad) bf16  zero-padded patch rows (row 0 of each image
                                   and the K-pad / T-pad columns/rows are 0).
    w_ref:   (K_pad, D)      bf16  flattened Conv2d weight (transposed),
                                   zero-padded along K. Grid-invariant.
    pos_ref: (tt, D)         f32   folded additive table slice for this
                                   token-tile: [cls+pos0 ; pos[1:]+bias ; 0pad].
    o_ref:   (bb, tt, D)           output tokens.
    """
    bb, tt, kp = lhs_ref.shape
    # Collapsing (bb, tt) is layout-free: tt is a multiple of 8, last dim kept.
    acc = jnp.dot(lhs_ref[...].reshape(bb * tt, kp), w_ref[...],
                  preferred_element_type=jnp.float32)
    acc = acc.reshape(bb, tt, -1) + pos_ref[...][None, :, :]
    o_ref[...] = acc.astype(o_ref.dtype)


def _round_up(x, m):
    return ((x + m - 1) // m) * m


def _vmem_capacity_bytes():
    """Physical VMEM of the local TPU (conservative 64 MiB fallback)."""
    try:
        cap = getattr(pltpu.get_tpu_info(), "vmem_capacity_bytes", None)
        if cap:
            return int(cap)
    except Exception:
        pass
    return 64 * 1024 * 1024


def _choose_tiles(B, T_pad, target_rows):
    """Pick (bb images, tt tokens) per tile: 8-aligned, ~target rows, >=2 steps."""
    tok_divs = [d for d in range(8, T_pad + 1, 8) if T_pad % d == 0]
    fitting = [d for d in tok_divs if d <= target_rows]
    tt = max(fitting) if fitting else min(tok_divs)

    bat_divs = [d for d in range(1, B + 1) if B % d == 0 and d * tt <= target_rows]
    bb = max(bat_divs) if bat_divs else 1

    # Guarantee at least 2 grid steps whenever the problem allows (v7x: 2 TCs).
    def steps(bb_, tt_):
        return (B // bb_) * (T_pad // tt_)

    if steps(bb, tt) < 2:
        smaller_b = [d for d in bat_divs if d < bb]
        smaller_t = [d for d in tok_divs if d < T_pad]
        if smaller_b:
            bb = max(smaller_b)
        elif smaller_t:
            tt = max(smaller_t)
    return bb, tt


@functools.partial(jax.jit, static_argnames=("patch_size", "out_dtype"))
def patch_embedding_forward(x, conv_w, conv_b, cls_token, pos_emb, *,
                            patch_size, out_dtype=None):
    """x: [B, C, H, W]. Returns [B, N+1, D] = cat([cls, conv_patches]) + pos."""
    B, C, H, W = x.shape
    p = patch_size
    Hp, Wp = H // p, W // p
    N = Hp * Wp
    D = conv_w.shape[0]
    K = C * p * p
    T = N + 1                               # tokens per image (cls + patches)
    T_pad = _round_up(T, 8)                 # decouple tiling from odd T
    K_pad = _round_up(K, 128)               # lane-dense LHS / full-depth MXU
    out_dtype = x.dtype if out_dtype is None else out_dtype
    out_bytes = jnp.dtype(out_dtype).itemsize

    # ---- XLA-side producers (materialized contiguously in HBM) --------------
    # Non-overlapping patchify; (c, kh, kw) flatten order matches the flattened
    # Conv2d weight. A zero row is prepended per image so the matmul emits the
    # cls row "for free" (0 @ W + (cls + pos[0])); trailing token rows and the
    # K padding are zeros too.
    xp = x.reshape(B, C, Hp, p, Wp, p)
    xp = jnp.transpose(xp, (0, 2, 4, 1, 3, 5))            # [B, Hp, Wp, C, p, p]
    patches = xp.reshape(B, N, K).astype(jnp.bfloat16)
    lhs = jnp.pad(patches, ((0, 0), (1, T_pad - T), (0, K_pad - K)))

    w_t = conv_w.reshape(D, K).T.astype(jnp.bfloat16)     # (K, D)
    w_t = jnp.pad(w_t, ((0, K_pad - K), (0, 0)))          # (K_pad, D)

    # Batch-invariant additive table: row 0 = cls + pos[0]; rows 1..N =
    # pos[1:] + conv bias; padded rows = 0 (sliced off below).
    pos = pos_emb.reshape(T, D).astype(jnp.float32)
    cls_row = cls_token.reshape(1, D).astype(jnp.float32) + pos[0:1]
    body_rows = pos[1:] + conv_b.reshape(1, D).astype(jnp.float32)
    pos_aug = jnp.concatenate([cls_row, body_rows], axis=0)          # (T, D)
    pos_aug = jnp.pad(pos_aug, ((0, T_pad - T), (0, 0)))             # (T_pad, D)

    # ---- tiling + VMEM budget (generation-aware) ----------------------------
    vmem_cap = _vmem_capacity_bytes()
    target_rows = 512 if vmem_cap <= 64 * 1024 * 1024 else 1024
    bb, tt = _choose_tiles(B, T_pad, target_rows)

    need = (2 * bb * tt * K_pad * 2          # lhs tiles  (double-buffered bf16)
            + 2 * bb * tt * D * out_bytes    # out tiles  (double-buffered)
            + 2 * K_pad * D * 2              # weight     (grid-invariant, 2x)
            + 2 * tt * D * 4)                # pos slice  (2x)
    cap = int(vmem_cap * 7 // 8)             # ~56 MiB on v7x, ~112 MiB on v5e/v6e
    vmem_limit = min(cap, max(need + (4 << 20), 32 << 20))
    vmem_limit = max(vmem_limit, need + (1 << 20))   # never clamp below need

    cost = pl.CostEstimate(
        flops=2 * B * T_pad * K_pad * D,
        bytes_accessed=(B * T_pad * K_pad * 2 + K_pad * D * 2
                        + T_pad * D * 4 + B * T_pad * D * out_bytes),
        transcendentals=0,
    )

    out_padded = pl.pallas_call(
        _patch_embed_kernel,
        out_shape=jax.ShapeDtypeStruct((B, T_pad, D), out_dtype),
        grid=(B // bb, T_pad // tt),
        in_specs=[
            pl.BlockSpec((bb, tt, K_pad), lambda b, t: (b, t, 0)),  # patch rows
            pl.BlockSpec((K_pad, D), lambda b, t: (0, 0)),          # weight (invariant)
            pl.BlockSpec((tt, D), lambda b, t: (t, 0)),             # pos slice (not replicated)
        ],
        out_specs=pl.BlockSpec((bb, tt, D), lambda b, t: (b, t, 0)),
        compiler_params=pltpu.CompilerParams(
            dimension_semantics=("parallel", "parallel"),  # independent tiles -> both TCs
            vmem_limit_bytes=int(vmem_limit),
        ),
        cost_estimate=cost,
    )(lhs, w_t, pos_aug)

    return out_padded[:, :T, :]              # drop the token padding


if __name__ == "__main__":
    # Small shapes consistent with the module's forward:
    # img_size=16, patch_size=4, in_channels=4, embed_dim=128, batch=2.
    B, C, H, W = 2, 4, 16, 16
    patch_size = 4
    embed_dim = 128
    N = (H // patch_size) * (W // patch_size)

    key = jax.random.PRNGKey(0)
    k_x, k_w, k_b, k_pos = jax.random.split(key, 4)

    x = jax.random.normal(k_x, (B, C, H, W), dtype=jnp.float32)
    conv_w = 0.02 * jax.random.normal(
        k_w, (embed_dim, C, patch_size, patch_size), dtype=jnp.float32)
    conv_b = 0.01 * jax.random.normal(k_b, (embed_dim,), dtype=jnp.float32)
    cls_token = jnp.zeros((1, 1, embed_dim), dtype=jnp.float32)   # torch.zeros
    pos_emb = jax.random.normal(
        k_pos, (1, N + 1, embed_dim), dtype=jnp.float32)          # torch.randn

    out = patch_embedding_forward(x, conv_w, conv_b, cls_token, pos_emb,
                                  patch_size=patch_size)
    out = jax.block_until_ready(out)

    # Pure-JAX f32 reference (same math as PyTorch Conv2d stride==kernel patchify).
    xp = x.reshape(B, C, H // patch_size, patch_size, W // patch_size,
                   patch_size)
    xp = jnp.transpose(xp, (0, 2, 4, 1, 3, 5)).reshape(B, N, -1)
    ref_emb = xp @ conv_w.reshape(embed_dim, -1).T + conv_b
    ref = jnp.concatenate(
        [jnp.broadcast_to(cls_token, (B, 1, embed_dim)), ref_emb], axis=1)
    ref = ref + pos_emb

    assert out.shape == (B, N + 1, embed_dim)
    # bf16 MXU operands with f32 accumulation -> compare at ~1e-2 tolerance.
    # TODO(synk): bf16 operands deviate from PyTorch's f32 Conv2d; keep f32
    # operands if bit-level parity with the PyTorch module is required.
    assert jnp.allclose(out, ref, atol=2e-2, rtol=2e-2), float(
        jnp.max(jnp.abs(out - ref)))
    print("KERNEL_OK")
</pallas_src>

<mosaic_0001>
module attributes {stable_mosaic.version = 11 : i64} {
  func.func @_patch_embed_kernel(%arg0: i32, %arg1: i32, %arg2: memref<1x24x128xbf16, #tpu.memory_space<vmem>>, %arg3: memref<128x128xbf16, #tpu.memory_space<vmem>>, %arg4: memref<24x128xf32, #tpu.memory_space<vmem>>, %arg5: memref<1x24x128xf32, #tpu.memory_space<vmem>>) attributes {dimension_semantics = [#tpu.dimension_semantics<parallel>, #tpu.dimension_semantics<parallel>], iteration_bounds = array<i64: 2, 1>, scalar_prefetch = 0 : i64, scratch_operands = 0 : i64, tpu.core_type = #tpu.core_type<tc>, window_params = [{transform_indices = @transform_0, window_bounds = array<i64: 1, 24, 128>}, {pipeline_mode = #tpu.pipeline_mode<synchronous>, transform_indices = @transform_1, window_bounds = array<i64: 128, 128>}, {transform_indices = @transform_2, window_bounds = array<i64: 24, 128>}, {transform_indices = @transform_3, window_bounds = array<i64: 1, 24, 128>}]} {
    %c0 = arith.constant 0 : index
    %c0_0 = arith.constant 0 : index
    %c0_1 = arith.constant 0 : index
    %0 = vector.load %arg2[%c0, %c0_0, %c0_1] : memref<1x24x128xbf16, #tpu.memory_space<vmem>>, vector<1x24x128xbf16>
    %1 = vector.shape_cast %0 : vector<1x24x128xbf16> to vector<24x128xbf16>
    %c0_2 = arith.constant 0 : index
    %c0_3 = arith.constant 0 : index
    %2 = vector.load %arg3[%c0_2, %c0_3] : memref<128x128xbf16, #tpu.memory_space<vmem>>, vector<128x128xbf16>
    %cst = arith.constant dense<0.000000e+00> : vector<24x128xf32>
    %3 = tpu.matmul %1, %2, %cst {dimension_numbers = #tpu.dot_dimension_numbers<[1], [0], [0], [1], [0, 0, 1, 1], [], []>} : vector<24x128xbf16>, vector<128x128xbf16>, vector<24x128xf32> -> vector<24x128xf32>
    %4 = vector.shape_cast %3 : vector<24x128xf32> to vector<1x24x128xf32>
    %c0_4 = arith.constant 0 : index
    %c0_5 = arith.constant 0 : index
    %5 = vector.load %arg4[%c0_4, %c0_5] : memref<24x128xf32, #tpu.memory_space<vmem>>, vector<24x128xf32>
    %6 = vector.shape_cast %5 : vector<24x128xf32> to vector<1x24x128xf32>
    %7 = arith.addf %4, %6 : vector<1x24x128xf32>
    %c0_6 = arith.constant 0 : index
    %c0_7 = arith.constant 0 : index
    %c0_8 = arith.constant 0 : index
    %8 = vector.load %arg5[%c0_6, %c0_7, %c0_8] : memref<1x24x128xf32, #tpu.memory_space<vmem>>, vector<1x24x128xf32>
    tpu.vector_store %arg5[%c0_6, %c0_7, %c0_8], %7 {strides = array<i32>} : memref<1x24x128xf32, #tpu.memory_space<vmem>>, vector<1x24x128xf32>,
    return
  }
  func.func @transform_0(%arg0: i32, %arg1: i32) -> (i32, i32, i32) {
    %c0_i32 = arith.constant 0 : i32
    %c0_i32_0 = arith.constant 0 : i32
    return %arg0, %arg1, %c0_i32 : i32, i32, i32
  }
  func.func @transform_1(%arg0: i32, %arg1: i32) -> (i32, i32) {
    %c0_i32 = arith.constant 0 : i32
    %c0_i32_0 = arith.constant 0 : i32
    %c0_i32_1 = arith.constant 0 : i32
    return %c0_i32, %c0_i32_0 : i32, i32
  }
  func.func @transform_2(%arg0: i32, %arg1: i32) -> (i32, i32) {
    %c0_i32 = arith.constant 0 : i32
    %c0_i32_0 = arith.constant 0 : i32
    return %arg1, %c0_i32 : i32, i32
  }
  func.func @transform_3(%arg0: i32, %arg1: i32) -> (i32, i32, i32) {
    %c0_i32 = arith.constant 0 : i32
    %c0_i32_0 = arith.constant 0 : i32
    return %arg0, %arg1, %c0_i32 : i32, i32, i32
  }
}

</mosaic_0001>

<llo_original>
// kernel: patch_embedding_forward.1
$region0: #{patch_embedding_forward.1}
  #allocation0 [shape = 'u32[]', space=smem, size = 0x4, offset = 0x4, fixed_abs, tag = 'smem constant byte address 0x4 - core index']
  #allocation1 [shape = 'u32[144,128]{1,0:T(1,128)}', space=vmem, size = 0x12000, scoped, tag = 'internal scratch']
  %s0 = inlined_call_operand.vmem [shape: bf16[2,24,128], index: 0, kind: input, shape index: {}]
  %s1 = inlined_call_operand.vmem [shape: bf16[128,128], index: 1, kind: input, shape index: {}]
  %s2 = inlined_call_operand.vmem [shape: f32[24,128], index: 2, kind: input, shape index: {}]
  %s3 = inlined_call_operand.vmem [shape: f32[2,24,128], index: 3, kind: output, shape index: {}]
  %s4 = sld [smem:[#allocation0]]
  $region45: #{patch_embedding_forward.1} parent=0
    _
  %s6 = ssub.s32 1, %s4
  %s7 = scalar_select 0, %s6, %s4
  loop: start=0, step=1, limit=4
  $region2: #{patch_embedding_forward.1} parent=0 // loop_pre_header
    _
  $region3: #{patch_embedding_forward.1} parent=0 // loop_header
    %s9 = sphi 0, %s13
    %p10 = scmp.ge.s32.totalorder %s9, 4
    %s16 = sphi 0, %s28
    %s17 = sphi 0, %s24
    %s18 = sphi 0, %s16
    %s19 = sphi 0, %s17
    %s20 = sphi 0, %s18
    %s21 = sphi 0, %s19
    %s33 = sphi 0, %s35
    %s36 = sphi 0, %s33
    %s37 = sphi 0, %s36
    %s53 = sphi 0, %s37
    %s57 = sphi 0, %s57
    %s59 = sphi 0, %s57
    %s60 = sphi 0, %s59
    %s74 = sphi 0, %s60
    %s80 = sphi 0, %s82
    %s83 = sphi 0, %s80
    %s84 = sphi 0, %s83
    %s100 = sphi 0, %s84
    %s108 = sphi 0, %s110
    %s111 = sphi 0, %s108
    %s112 = sphi 0, %s111
    %s128 = sphi 0, %s112
  $region4: #{patch_embedding_forward.1} parent=0 // loop_header_branch
    %12 = sbr.rel (%p10) target = $region8
  $region5: #{patch_embedding_forward.1} parent=0 // loop_body
    %s14 = ssub.s32 %s9, 1
    %s15 = ssub.s32 %s9, 2
    %s22 = sadd.s32 1, %s17
    %p23 = scmp.ge.s32.totalorder %s22, 1
    %s24 = scalar_select %p23, 0, %s22
    %s25 = sadd.s32 1, %s16
    %s26 = scalar_select %p23, %s25, %s16
    %p27 = scmp.ge.s32.totalorder %s26, 2
    %s28 = scalar_select %p27, 0, %s26
    %s29 = ssub.s32 %s16, %s28
    %s30 = ssub.s32 %s17, %s24
    %s31 = sor.u32 %s29, %s30
    %p32 = scmp.eq.s32.totalorder %s31, 0
    %s34 = sadd.s32 %s33, 1
    %s35 = scalar_select %p32, %s33, %s34
    %p38 = pneg %p32
    %p39 = scmp.eq.s32.totalorder %s9, 1
    %p40 = por %p38, %p39
    %p41 = scmp.ne.s32.totalorder %s33, %s36
    %p42 = scmp.eq.s32.totalorder %s9, 0
    %p43 = por %p41, %p42
    %p44 = scmp.ne.s32.totalorder %s33, %s36
    %p45 = scmp.eq.s32.totalorder %s14, 1
    %p46 = por %p44, %p45
    %p47 = scmp.ne.s32.totalorder %s36, %s37
    %p48 = scmp.eq.s32.totalorder %s14, 0
    %p49 = por %p47, %p48
    %p50 = scmp.ne.s32.totalorder %s36, %s37
    %p51 = scmp.eq.s32.totalorder %s15, 1
    %p52 = por %p50, %p51
    %p54 = scmp.ne.s32.totalorder %s37, %s53
    %p55 = scmp.eq.s32.totalorder %s15, 0
    %p56 = por %p54, %p55
    %s58 = sadd.s32 %s57, 1
    %p61 = scmp.eq.s32.totalorder %s9, 1
    %p62 = scmp.ne.s32.totalorder %s57, %s59
    %p63 = scmp.eq.s32.totalorder %s9, 0
    %p64 = por %p62, %p63
    %p65 = scmp.ne.s32.totalorder %s57, %s59
    %p66 = scmp.eq.s32.totalorder %s14, 1
    %p67 = por %p65, %p66
    %p68 = scmp.ne.s32.totalorder %s59, %s60
    %p69 = scmp.eq.s32.totalorder %s14, 0
    %p70 = por %p68, %p69
    %p71 = scmp.ne.s32.totalorder %s59, %s60
    %p72 = scmp.eq.s32.totalorder %s15, 1
    %p73 = por %p71, %p72
    %p75 = scmp.ne.s32.totalorder %s60, %s74
    %p76 = scmp.eq.s32.totalorder %s15, 0
    %p77 = por %p75, %p76
    %s78 = ssub.s32 %s17, %s24
    %p79 = scmp.eq.s32.totalorder %s78, 0
    %s81 = sadd.s32 %s80, 1
    %s82 = scalar_select %p79, %s80, %s81
    %p85 = pneg %p79
    %p86 = scmp.eq.s32.totalorder %s9, 1
    %p87 = por %p85, %p86
    %p88 = scmp.ne.s32.totalorder %s80, %s83
    %p89 = scmp.eq.s32.totalorder %s9, 0
    %p90 = por %p88, %p89
    %p91 = scmp.ne.s32.totalorder %s80, %s83
    %p92 = scmp.eq.s32.totalorder %s14, 1
    %p93 = por %p91, %p92
    %p94 = scmp.ne.s32.totalorder %s83, %s84
    %p95 = scmp.eq.s32.totalorder %s14, 0
    %p96 = por %p94, %p95
    %p97 = scmp.ne.s32.totalorder %s83, %s84
    %p98 = scmp.eq.s32.totalorder %s15, 1
    %p99 = por %p97, %p98
    %p101 = scmp.ne.s32.totalorder %s84, %s100
    %p102 = scmp.eq.s32.totalorder %s15, 0
    %p103 = por %p101, %p102
    %s104 = ssub.s32 %s16, %s28
    %s105 = ssub.s32 %s17, %s24
    %s106 = sor.u32 %s104, %s105
    %p107 = scmp.eq.s32.totalorder %s106, 0
    %s109 = sadd.s32 %s108, 1
    %s110 = scalar_select %p107, %s108, %s109
    %p113 = pneg %p107
    %p114 = scmp.eq.s32.totalorder %s9, 1
    %p115 = por %p113, %p114
    %p116 = scmp.ne.s32.totalorder %s108, %s111
    %p117 = scmp.eq.s32.totalorder %s9, 0
    %p118 = por %p116, %p117
    %p119 = scmp.ne.s32.totalorder %s108, %s111
    %p120 = scmp.eq.s32.totalorder %s14, 1
    %p121 = por %p119, %p120
    %p122 = scmp.ne.s32.totalorder %s111, %s112
    %p123 = scmp.eq.s32.totalorder %s14, 0
    %p124 = por %p122, %p123
    %p125 = scmp.ne.s32.totalorder %s111, %s112
    %p126 = scmp.eq.s32.totalorder %s15, 1
    %p127 = por %p125, %p126
    %p129 = scmp.ne.s32.totalorder %s112, %s128
    %p130 = scmp.eq.s32.totalorder %s15, 0
    %p131 = por %p129, %p130
    %p132 = scmp.le.s32.totalorder 1, %s9
    %p133 = scmp.lt.s32.totalorder %s9, 3
    %p134 = pnand %p132, %p133
    %p135 = pneg %p134
    // Predicated region
    $region9: #{patch_embedding_forward.1} parent=5 // pred_check
      _
    $region10: #{patch_embedding_forward.1} parent=5 // pred_check_branch
      %137 = sbr.rel (%p134) target = $region12
    $region11: #{patch_embedding_forward.1} parent=5 // pred_region
      %s138 = ssub.s32 %s9, 1
      // Predicated region
      $region13: #{patch_embedding_forward.1} parent=11 // pred_check
        %p139 = pneg %p70
      $region14: #{patch_embedding_forward.1} parent=11 // pred_check_branch
        %141 = sbr.rel (%p139) target = $region16
      $region15: #{patch_embedding_forward.1} parent=11 // pred_region
        _
      $region16: #{patch_embedding_forward.1} parent=11 // pred_fallthru
        _
      // Predicated region
      $region17: #{patch_embedding_forward.1} parent=11 // pred_check
        %p142 = pneg %p96
      $region18: #{patch_embedding_forward.1} parent=11 // pred_check_branch
        %144 = sbr.rel (%p142) target = $region20
      $region19: #{patch_embedding_forward.1} parent=11 // pred_region
        %s145 = smul.u32 3, %s19
        %p146 = scmp.lt.s32.totalorder %s145, 2
        %s147 = scalar_select %p146, %s145, 2
        %s148 = smul.addr %s147, 8
        %s149 = scalar_lea.vmem %s2, %s148
        %s150 = smul.u32 3, %s19
      $region20: #{patch_embedding_forward.1} parent=11 // pred_fallthru
        _
    $region12: #{patch_embedding_forward.1} parent=5 // pred_fallthru
      _
    %p151 = scmp.lt.s32.totalorder %s9, 2
    // Predicated region
    $region21: #{patch_embedding_forward.1} parent=5 // pred_check
      %p152 = pneg %p151
    $region22: #{patch_embedding_forward.1} parent=5 // pred_check_branch
      %154 = sbr.rel (%p152) target = $region24
    $region23: #{patch_embedding_forward.1} parent=5 // pred_region
      // Predicated region
      $region25: #{patch_embedding_forward.1} parent=23 // pred_check
        %p155 = pneg %p43
      $region26: #{patch_embedding_forward.1} parent=23 // pred_check_branch
        %157 = sbr.rel (%p155) target = $region28
      $region27: #{patch_embedding_forward.1} parent=23 // pred_region
        %s158 = smul.u32 3, %s17
        %p159 = scmp.lt.s32.totalorder %s16, 1
        %s160 = scalar_select %p159, %s16, 1
        %p161 = scmp.lt.s32.totalorder %s158, 2
        %s162 = scalar_select %p161, %s158, 2
        %s163 = smul.addr %s160, 3
        %s164 = sadd.s32 %s162, %s163
        %s165 = smul.addr %s164, 4
        %s166 = scalar_lea.vmem %s0, %s165
        %s167 = smul.u32 3, %s17
      $region28: #{patch_embedding_forward.1} parent=23 // pred_fallthru
        _
    $region24: #{patch_embedding_forward.1} parent=5 // pred_fallthru
      _
    %p168 = scmp.le.s32.totalorder 1, %s9
    %p169 = scmp.lt.s32.totalorder %s9, 3
    %p170 = pnand %p168, %p169
    %p171 = pneg %p170
    // Predicated region
    $region29: #{patch_embedding_forward.1} parent=5 // pred_check
      _
    $region30: #{patch_embedding_forward.1} parent=5 // pred_check_branch
      %173 = sbr.rel (%p170) target = $region32
    $region31: #{patch_embedding_forward.1} parent=5 // pred_region
      %s174 = ssub.s32 %s9, 1
      %s175 = smul.u32 3, %s19
      %p176 = scmp.lt.s32.totalorder %s18, 1
      %s177 = scalar_select %p176, %s18, 1
      %p178 = scmp.lt.s32.totalorder %s175, 2
      %s179 = scalar_select %p178, %s175, 2
      %s180 = smul.addr %s177, 3
      %s181 = sadd.s32 %s179, %s180
      %s182 = smul.addr %s181, 4
      %s183 = scalar_lea.vmem %s0, %s182
      %p184 = pneg %p49
      %p185 = pneg %p46
      %p186 = pneg %p70
      %p187 = pneg %p67
      %s188 = smul.u32 3, %s19
      %p189 = scmp.lt.s32.totalorder %s188, 2
      %s190 = scalar_select %p189, %s188, 2
      %s191 = smul.addr %s190, 8
      %s192 = scalar_lea.vmem %s2, %s191
      %p193 = pneg %p96
      %p194 = pneg %p93
      %p195 = pneg %p124
      %p196 = pneg %p121
      %s197 = smul.u32 3, %s19
      %p198 = scmp.lt.s32.totalorder %s18, 1
      %s199 = scalar_select %p198, %s18, 1
      %p200 = scmp.lt.s32.totalorder %s197, 2
      %s201 = scalar_select %p200, %s197, 2
      %s202 = smul.addr %s199, 3
      %s203 = sadd.s32 %s201, %s202
      %s204 = smul.addr %s203, 8
      %s205 = scalar_lea.vmem %s3, %s204
      %s206 = smul.u32 3, %s19
      %p207 = scmp.lt.s32.totalorder %s18, 1
      %s208 = scalar_select %p207, %s18, 1
      %p209 = scmp.lt.s32.totalorder %s206, 2
      %s210 = scalar_select %p209, %s206, 2
      %s211 = smul.addr %s208, 3
      %s212 = sadd.s32 %s210, %s211
      %s213 = smul.addr %s212, 4
      %s214 = scalar_lea.vmem %s0, %s213
      %s215 = smul.u32 3, %s19
      %s216 = smul.u32 3, %s19
      %p217 = scmp.lt.s32.totalorder %s216, 2
      %s218 = scalar_select %p217, %s216, 2
      %s219 = smul.addr %s218, 8
      %s220 = scalar_lea.vmem %s2, %s219
      %s221 = smul.u32 3, %s19
      %s222 = smul.u32 3, %s19
      %p223 = scmp.lt.s32.totalorder %s18, 1
      %s224 = scalar_select %p223, %s18, 1
      %p225 = scmp.lt.s32.totalorder %s222, 2
      %s226 = scalar_select %p225, %s222, 2
      %s227 = smul.addr %s224, 3
      %s228 = sadd.s32 %s226, %s227
      %s229 = smul.addr %s228, 8
      %s230 = scalar_lea.vmem %s3, %s229
      %s231 = smul.u32 3, %s19
      %v233 = vld [vmem:[%s214] sm:$0xf]
      %v234 = vld [vmem:[%s214 + $0x4] sm:$0xf]
      %v235 = vld [vmem:[%s214 + $0x8] sm:$0xf]
      %v236 = vld [vmem:[%s1] sm:$0xf]
      %v237 = vld [vmem:[%s1 + $0x4] sm:$0xf]
      %v238 = vld [vmem:[%s1 + $0x8] sm:$0xf]
      %v239 = vld [vmem:[%s1 + $0xc] sm:$0xf]
      %v240 = vld [vmem:[%s1 + $0x10] sm:$0xf]
      %v241 = vld [vmem:[%s1 + $0x14] sm:$0xf]
      %v242 = vld [vmem:[%s1 + $0x18] sm:$0xf]
      %v243 = vld [vmem:[%s1 + $0x1c] sm:$0xf]
      %v244 = vld [vmem:[%s1 + $0x20] sm:$0xf]
      %v245 = vld [vmem:[%s1 + $0x24] sm:$0xf]
      %v246 = vld [vmem:[%s1 + $0x28] sm:$0xf]
      %v247 = vld [vmem:[%s1 + $0x2c] sm:$0xf]
      %v248 = vld [vmem:[%s1 + $0x30] sm:$0xf]
      %v249 = vld [vmem:[%s1 + $0x34] sm:$0xf]
      %v250 = vld [vmem:[%s1 + $0x38] sm:$0xf]
      %v251 = vld [vmem:[%s1 + $0x3c] sm:$0xf]
      %v255 = vunpack.c.l.b16 %v233
      %v256 = vunpack.c.l.b16 %v234
      %v257 = vunpack.c.l.b16 %v235
      %v258 = vpack.c.b16 %v256, %v255
      %v259 = vpack.c.b16 %v257, %v257
      %v278 = vunpack.c.l.b16 %v236
      %v279 = vunpack.c.l.b16 %v237
      %v280 = vunpack.c.l.b16 %v238
      %v281 = vunpack.c.l.b16 %v239
      %v282 = vunpack.c.l.b16 %v240
      %v283 = vunpack.c.l.b16 %v241
      %v284 = vunpack.c.l.b16 %v242
      %v285 = vunpack.c.l.b16 %v243
      %v286 = vunpack.c.l.b16 %v244
      %v287 = vunpack.c.l.b16 %v245
      %v288 = vunpack.c.l.b16 %v246
      %v289 = vunpack.c.l.b16 %v247
      %v290 = vunpack.c.l.b16 %v248
      %v291 = vunpack.c.l.b16 %v249
      %v292 = vunpack.c.l.b16 %v250
      %v293 = vunpack.c.l.b16 %v251
      %v294 = vpack.c.b16 %v279, %v278
      %v295 = vpack.c.b16 %v281, %v280
      %v296 = vpack.c.b16 %v283, %v282
      %v297 = vpack.c.b16 %v285, %v284
      %v298 = vpack.c.b16 %v287, %v286
      %v299 = vpack.c.b16 %v289, %v288
      %v300 = vpack.c.b16 %v291, %v290
      %v301 = vpack.c.b16 %v293, %v292
      %310 = vmatprep.subr.bf16.mxu0 0
      %311 = vmatpush1.bf16.msra.mxu0 %v294
      %312 = vmatprep.subr.bf16.mxu0 0
      %313 = vmatpush1.bf16.msra.mxu0 %v295
      %314 = vmatprep.subr.bf16.mxu0 0
      %315 = vmatpush1.bf16.msra.mxu0 %v296
      %316 = vmatprep.subr.bf16.mxu0 0
      %317 = vmatpush1.bf16.msra.mxu0 %v297
      %318 = vmatprep.subr.bf16.mxu0 0
      %319 = vmatpush1.bf16.msra.mxu0 %v298
      %320 = vmatprep.subr.bf16.mxu0 0
      %321 = vmatpush1.bf16.msra.mxu0 %v299
      %322 = vmatprep.subr.bf16.mxu0 0
      %323 = vmatpush1.bf16.msra.mxu0 %v300
      %324 = vmatprep.subr.bf16.mxu0 0
      %325 = vmatpush1.bf16.msra.mxu0 %v301
      %326 = vmatprep.subr.bf16.mxu0 0
      %327 = vmatpush1.bf16.msra.mxu0 0
      %328 = vmatprep.subr.bf16.mxu0 0
      %329 = vmatpush1.bf16.msra.mxu0 0
      %330 = vmatprep.subr.bf16.mxu0 0
      %331 = vmatpush1.bf16.msra.mxu0 0
      %332 = vmatprep.subr.bf16.mxu0 0
      %333 = vmatpush1.bf16.msra.mxu0 0
      %334 = vmatprep.subr.bf16.mxu0 0
      %335 = vmatpush1.bf16.msra.mxu0 0
      %336 = vmatprep.subr.bf16.mxu0 0
      %337 = vmatpush1.bf16.msra.mxu0 0
      %338 = vmatprep.subr.bf16.mxu0 0
      %339 = vmatpush1.bf16.msra.mxu0 0
      %340 = vmatprep.subr.bf16.mxu0 0
      %341 = vmatpush1.bf16.msra.mxu0 0
      %342 = vmatprep.mubr.bf16.mxu0 0
      %343 = vmatmul.mubr.bf16.gmra.mrb[0].mxu0 %v258
      %v344 = vpop.f32.mrb[0].mxu0
      %v345 = vadd.f32 0.0, %v344
      %v346 = vpop.f32.mrb[0].mxu0
      %v347 = vpop.f32.mrb[0].mxu0
      %v348 = vadd.f32 0.0, %v347
      %v349 = vpop.f32.mrb[0].mxu0
      %350 = vmatprep.mubr.bf16.mxu0 0
      %351 = vmatmul.mubr.bf16.gmra.mrb[0].mxu0 %v259
      %v352 = vpop.f32.mrb[0].mxu0
      %v353 = vadd.f32 0.0, %v352
      %v354 = vpop.f32.mrb[0].mxu0
      %v355 = vpop.f32.mrb[0].mxu0
      %v356 = vpop.f32.mrb[0].mxu0
      %357 = vdwg.mxu0
      %v358 = vld [vmem:[%s220] sm:$0xff]
      %v359 = vld [vmem:[%s220 + $0x8] sm:$0xff]
      %v360 = vld [vmem:[%s220 + $0x10] sm:$0xff]
      %v361 = vadd.f32 %v345, %v358
      %v362 = vadd.f32 %v348, %v359
      %v363 = vadd.f32 %v353, %v360
      %364 = vst [vmem:[%s230] sm:$0xff] %v361
      %365 = vst [vmem:[%s230 + $0x8] sm:$0xff] %v362
      %366 = vst [vmem:[%s230 + $0x10] sm:$0xff] %v363
      %s367 = smul.u32 3, %s19
      %p368 = scmp.lt.s32.totalorder %s18, 1
      %s369 = scalar_select %p368, %s18, 1
      %p370 = scmp.lt.s32.totalorder %s367, 2
      %s371 = scalar_select %p370, %s367, 2
      %s372 = smul.addr %s369, 3
      %s373 = sadd.s32 %s371, %s372
      %s374 = smul.addr %s373, 8
      %s375 = scalar_lea.vmem %s3, %s374
      // Predicated region
      $region33: #{patch_embedding_forward.1} parent=31 // pred_check
        %p376 = pneg %p121
      $region34: #{patch_embedding_forward.1} parent=31 // pred_check_branch
        %378 = sbr.rel (%p376) target = $region36
      $region35: #{patch_embedding_forward.1} parent=31 // pred_region
        %s379 = smul.u32 3, %s19
      $region36: #{patch_embedding_forward.1} parent=31 // pred_fallthru
        _
    $region32: #{patch_embedding_forward.1} parent=5 // pred_fallthru
      _
    %p380 = scmp.le.s32.totalorder 2, %s9
    // Predicated region
    $region37: #{patch_embedding_forward.1} parent=5 // pred_check
      %p381 = pneg %p380
    $region38: #{patch_embedding_forward.1} parent=5 // pred_check_branch
      %383 = sbr.rel (%p381) target = $region40
    $region39: #{patch_embedding_forward.1} parent=5 // pred_region
      %s384 = ssub.s32 %s9, 2
      // Predicated region
      $region41: #{patch_embedding_forward.1} parent=39 // pred_check
        %p385 = pneg %p127
      $region42: #{patch_embedding_forward.1} parent=39 // pred_check_branch
        %387 = sbr.rel (%p385) target = $region44
      $region43: #{patch_embedding_forward.1} parent=39 // pred_region
        %s388 = smul.u32 3, %s21
        %p389 = scmp.lt.s32.totalorder %s20, 1
        %s390 = scalar_select %p389, %s20, 1
        %p391 = scmp.lt.s32.totalorder %s388, 2
        %s392 = scalar_select %p391, %s388, 2
        %s393 = smul.addr %s390, 3
        %s394 = sadd.s32 %s392, %s393
        %s395 = smul.addr %s394, 8
        %s396 = scalar_lea.vmem %s3, %s395
      $region44: #{patch_embedding_forward.1} parent=39 // pred_fallthru
        _
    $region40: #{patch_embedding_forward.1} parent=5 // pred_fallthru
      _
  $region6: #{patch_embedding_forward.1} parent=0 // loop_footer
    %s13 = sadd.s32 1, %s9
  $region7: #{patch_embedding_forward.1} parent=0 // loop_footer_branch
    %8 = sbr.rel target = $region3
  $region8: #{patch_embedding_forward.1} parent=0 // loop_exit
    _

</llo_original>
